<compile_context>
chip_gen: v6e
topology: v6e:2x2x1
jax: 0.10.0
libtpu: 0.0.40
codegen_flags: <defaults>
</compile_context>

<pallas_src>
import functools

import numpy as np
import jax
import jax.numpy as jnp
from jax.experimental import pallas as pl
from jax.experimental.pallas import tpu as pltpu

ALPHA = 1e-5
QUANTS = 256

_ROW_BLOCK_TARGET = 256      # rows per tile (sublane axis)
_LANE_BLOCK_TARGET = 4096    # lanes per tile (multiple of 128)
_VMEM_LIMIT_BYTES = 48 * 1024 * 1024   # > worst-case double-buffered streams,
                                       # < v7x 64 MiB physical VMEM


# ----------------------------------------------------------------------------
# Block / grid selection
# ----------------------------------------------------------------------------
def _row_align(itemsize):
    # sublane tile height: (32,128) for 8-bit, (16,128) for 16-bit, (8,128) f32
    return {1: 32, 2: 16}.get(int(itemsize), 8)


def _pick_row_block(B, align):
    """Row block: aligned, <= target, and >= 2 batch tiles when possible so
    both TensorCores on a v7x chip get work (batch is the 'parallel' axis)."""
    if B <= _ROW_BLOCK_TARGET:
        if B >= 2 * align:
            half = -(-B // 2)                       # ceil(B / 2)
            return -(-half // align) * align        # round up to alignment
        return B                                    # tiny batch: full extent
    return (_ROW_BLOCK_TARGET // align) * align


def _pick_lane_block(D):
    if D <= _LANE_BLOCK_TARGET:
        return D                                    # full extent always legal
    return _LANE_BLOCK_TARGET                       # multiple of 128


def _to_f32(x):
    """Cast a block to f32 via guaranteed-supported lowering paths."""
    if jnp.issubdtype(x.dtype, jnp.integer):
        x = x.astype(jnp.int32)
    return x.astype(jnp.float32)


# ----------------------------------------------------------------------------
# Forward direction (reverse=False): dequant -> inverse sigmoid (logit)
# ----------------------------------------------------------------------------
def _dequant_fwd_kernel(z_ref, noise_ref, ld_ref, z_out_ref, ld_out_ref,
                        *, d_total, ragged):
    di = pl.program_id(1)
    bd = z_ref.shape[1]

    zf = _to_f32(z_ref[...])                        # on-chip cast (narrow in)
    zf = (zf + noise_ref[...]) * (1.0 / QUANTS)     # dequantize to [0, 1)
    zf = zf * (1.0 - ALPHA) + 0.5 * ALPHA           # squeeze away from {0, 1}

    log_z = jnp.log(zf)
    log_1mz = jnp.log(1.0 - zf)
    z_out_ref[...] = (log_z - log_1mz).astype(z_out_ref.dtype)   # logit

    contrib = -log_z - log_1mz
    if ragged:   # mask pad lanes of the last D tile out of the row sums
        lane = jax.lax.broadcasted_iota(jnp.int32, contrib.shape, 1)
        valid = (di * bd + lane) < d_total
        contrib = jnp.where(valid, contrib, 0.0)
    per_row = jnp.sum(contrib, axis=1, keepdims=True)

    # log-det constant uses the FULL D and is added exactly once per row.
    @pl.when(di == 0)
    def _():
        const = (np.log(1.0 - ALPHA) - np.log(QUANTS)) * float(d_total)
        ld_out_ref[...] = ld_ref[...] + jnp.float32(const)

    ld_out_ref[...] = ld_out_ref[...] + per_row     # accumulate across D tiles


# ----------------------------------------------------------------------------
# Reverse direction (reverse=True): sigmoid -> rescale, floor, clamp
# ----------------------------------------------------------------------------
def _dequant_rev_kernel(z_ref, ld_ref, z_out_ref, ld_out_ref,
                        *, d_total, ragged):
    di = pl.program_id(1)
    bd = z_ref.shape[1]
    z = _to_f32(z_ref[...])

    # single exp per element: e = exp(-|z|)
    e = jnp.exp(-jnp.abs(z))
    # stable softplus(-z) = max(-z, 0) + log1p(e)
    sp_negz = jnp.maximum(-z, 0.0) + jnp.log1p(e)
    contrib = -z - 2.0 * sp_negz
    if ragged:
        lane = jax.lax.broadcasted_iota(jnp.int32, z.shape, 1)
        valid = (di * bd + lane) < d_total
        contrib = jnp.where(valid, contrib, 0.0)
    per_row = jnp.sum(contrib, axis=1, keepdims=True)

    # sigmoid(z) derived from the same e; exact f32 division so the
    # floor/clip bucket boundaries stay exact (no approx reciprocal).
    inv_1pe = 1.0 / (1.0 + e)
    s = jnp.where(z >= 0.0, inv_1pe, e * inv_1pe)
    s = (s - 0.5 * ALPHA) / (1.0 - ALPHA)
    s = s * QUANTS
    q = jnp.clip(jnp.floor(s), 0.0, float(QUANTS - 1)).astype(jnp.int32)
    z_out_ref[...] = q.astype(z_out_ref.dtype)      # int32 or uint8 output

    @pl.when(di == 0)
    def _():
        const = (np.log(QUANTS) - np.log(1.0 - ALPHA)) * float(d_total)
        ld_out_ref[...] = ld_ref[...] + jnp.float32(const)

    ld_out_ref[...] = ld_out_ref[...] + per_row


# ----------------------------------------------------------------------------
# Wrappers (glue: NCHW <-> (B, D), grid/block selection)
# ----------------------------------------------------------------------------
_CPARAMS_KW = dict(dimension_semantics=("parallel", "arbitrary"),
                   vmem_limit_bytes=_VMEM_LIMIT_BYTES)


def dequantization_forward(z, log_det_inv, noise=None, key=None):
    """reverse=False path.

    z:     (B, C, H, W) discrete values, any integer/float dtype (uint8 is the
           cheapest: the cast to f32 happens on-chip).
    noise: optional uniform[0,1) array with z's shape (exact-verification
           path).  If None, noise is generated with jax.random.uniform from
           `key` (defaults to PRNGKey(0)), mirroring torch.rand_like.
    """
    orig_shape = z.shape
    B = z.shape[0]
    D = int(np.prod(z.shape[1:]))
    z2 = z.reshape(B, D)                       # keep narrow dtype; cast on-chip
    ld2 = jnp.asarray(log_det_inv, jnp.float32).reshape(B, 1)

    if noise is None:
        key = jax.random.PRNGKey(0) if key is None else key
        noise2 = jax.random.uniform(key, (B, D), dtype=jnp.float32)
    else:
        noise2 = jnp.asarray(noise, jnp.float32).reshape(B, D)

    align = max(_row_align(z2.dtype.itemsize), 8)
    bm = _pick_row_block(B, align)
    bd = _pick_lane_block(D)
    grid = (pl.cdiv(B, bm), pl.cdiv(D, bd))
    ragged = (D % bd) != 0

    kernel = functools.partial(_dequant_fwd_kernel, d_total=D, ragged=ragged)
    grid_spec = pltpu.PrefetchScalarGridSpec(
        num_scalar_prefetch=0,
        grid=grid,
        in_specs=[
            pl.BlockSpec((bm, bd), lambda bi, di: (bi, di)),   # z (narrow)
            pl.BlockSpec((bm, bd), lambda bi, di: (bi, di)),   # noise (f32)
            pl.BlockSpec((bm, 1), lambda bi, di: (bi, 0)),     # log_det in
        ],
        out_specs=(
            pl.BlockSpec((bm, bd), lambda bi, di: (bi, di)),   # logit out
            pl.BlockSpec((bm, 1), lambda bi, di: (bi, 0)),     # log_det out
        ),
    )
    bytes_accessed = (z2.size * z2.dtype.itemsize + noise2.size * 4
                      + B * D * 4 + 2 * B * 4)
    z_out, ld_out = pl.pallas_call(
        kernel,
        out_shape=(jax.ShapeDtypeStruct((B, D), jnp.float32),
                   jax.ShapeDtypeStruct((B, 1), jnp.float32)),
        grid_spec=grid_spec,
        compiler_params=pltpu.CompilerParams(**_CPARAMS_KW),
        cost_estimate=pl.CostEstimate(flops=10 * B * D,
                                      transcendentals=2 * B * D,
                                      bytes_accessed=bytes_accessed),
    )(z2, noise2, ld2)

    return z_out.reshape(orig_shape), ld_out.reshape(B)


def dequantization_reverse(z, log_det_inv, out_dtype=jnp.int32):
    """reverse=True path. z: (B, C, H, W) continuous -> discrete values.

    out_dtype: int32 matches the PyTorch module; uint8 (values are 0..255)
    cuts the output HBM stream 4x on this memory-bound kernel.
    """
    orig_shape = z.shape
    B = z.shape[0]
    D = int(np.prod(z.shape[1:]))
    z2 = z.reshape(B, D)                       # keep caller dtype; cast on-chip
    ld2 = jnp.asarray(log_det_inv, jnp.float32).reshape(B, 1)

    out_itemsize = jnp.dtype(out_dtype).itemsize
    align = max(_row_align(z2.dtype.itemsize), _row_align(out_itemsize), 8)
    bm = _pick_row_block(B, align)
    bd = _pick_lane_block(D)
    grid = (pl.cdiv(B, bm), pl.cdiv(D, bd))
    ragged = (D % bd) != 0

    kernel = functools.partial(_dequant_rev_kernel, d_total=D, ragged=ragged)
    grid_spec = pltpu.PrefetchScalarGridSpec(
        num_scalar_prefetch=0,
        grid=grid,
        in_specs=[
            pl.BlockSpec((bm, bd), lambda bi, di: (bi, di)),
            pl.BlockSpec((bm, 1), lambda bi, di: (bi, 0)),
        ],
        out_specs=(
            pl.BlockSpec((bm, bd), lambda bi, di: (bi, di)),
            pl.BlockSpec((bm, 1), lambda bi, di: (bi, 0)),
        ),
    )
    bytes_accessed = (z2.size * z2.dtype.itemsize + B * D * out_itemsize
                      + 2 * B * 4)
    z_out, ld_out = pl.pallas_call(
        kernel,
        out_shape=(jax.ShapeDtypeStruct((B, D), out_dtype),
                   jax.ShapeDtypeStruct((B, 1), jnp.float32)),
        grid_spec=grid_spec,
        compiler_params=pltpu.CompilerParams(**_CPARAMS_KW),
        cost_estimate=pl.CostEstimate(flops=12 * B * D,
                                      transcendentals=2 * B * D,
                                      bytes_accessed=bytes_accessed),
    )(z2, ld2)
    return z_out.reshape(orig_shape), ld_out.reshape(B)


# ----------------------------------------------------------------------------
# Pure-JAX references (mirror the PyTorch module exactly)
# ----------------------------------------------------------------------------
def _ref_forward(z, ld, noise):
    D = float(np.prod(z.shape[1:]))
    zf = z.astype(jnp.float32)
    zf = (zf + noise) / QUANTS
    ld = ld - np.log(QUANTS) * D
    zf = zf * (1.0 - ALPHA) + 0.5 * ALPHA
    ld = ld + np.log(1.0 - ALPHA) * D
    ld = ld + jnp.sum(-jnp.log(zf) - jnp.log(1.0 - zf), axis=(1, 2, 3))
    zf = jnp.log(zf) - jnp.log(1.0 - zf)
    return zf, ld


def _ref_reverse(z, ld):
    D = float(np.prod(z.shape[1:]))
    ld = ld + jnp.sum(-z - 2.0 * jax.nn.softplus(-z), axis=(1, 2, 3))
    s = jax.nn.sigmoid(z)
    ld = ld - np.log(1.0 - ALPHA) * D
    s = (s - 0.5 * ALPHA) / (1.0 - ALPHA)
    s = s * QUANTS
    ld = ld + np.log(QUANTS) * D
    out = jnp.clip(jnp.floor(s), 0, QUANTS - 1).astype(jnp.int32)
    return out, ld, s   # also return pre-floor value for boundary masking


if __name__ == "__main__":
    key = jax.random.PRNGKey(0)
    k1, k2 = jax.random.split(key)

    B, C, H, W = 2, 4, 16, 16
    z_int = jax.random.randint(k1, (B, C, H, W), 0, QUANTS, dtype=jnp.int32)
    z_u8 = z_int.astype(jnp.uint8)          # narrow HBM stream into the kernel
    log_det_inv = jnp.zeros((B,), jnp.float32)
    noise = jax.random.uniform(k2, (B, C, H, W), dtype=jnp.float32)

    # (1) forward with explicit noise -> exact comparison vs. pure-JAX ref
    z_fwd, ld_fwd = dequantization_forward(z_u8, log_det_inv, noise=noise)
    jax.block_until_ready((z_fwd, ld_fwd))
    z_fwd_ref, ld_fwd_ref = _ref_forward(z_int, log_det_inv, noise)
    np.testing.assert_allclose(np.asarray(z_fwd), np.asarray(z_fwd_ref),
                               rtol=1e-5, atol=1e-5)
    np.testing.assert_allclose(np.asarray(ld_fwd), np.asarray(ld_fwd_ref),
                               rtol=1e-4, atol=1e-2)

    # (2) forward with module-default noise (jax.random, like torch.rand_like)
    z_fwd2, ld_fwd2 = dequantization_forward(z_u8, log_det_inv,
                                             key=jax.random.PRNGKey(7))
    jax.block_until_ready((z_fwd2, ld_fwd2))
    p = jax.nn.sigmoid(z_fwd2)
    implied = (p - 0.5 * ALPHA) / (1.0 - ALPHA) * QUANTS - z_int.astype(jnp.float32)
    implied = np.asarray(implied)
    assert implied.min() > -1e-3 and implied.max() < 1.0 + 1e-3, \
        "dequant noise outside [0, 1)"

    # (3) reverse (int32 output, module semantics) — round-trip (1)
    z_rev, ld_rev = dequantization_reverse(z_fwd, ld_fwd)
    jax.block_until_ready((z_rev, ld_rev))
    z_rev_ref, ld_rev_ref, s_pre = _ref_reverse(z_fwd, ld_fwd)
    np.testing.assert_allclose(np.asarray(ld_rev), np.asarray(ld_rev_ref),
                               rtol=1e-4, atol=1e-2)
    s_pre = np.asarray(s_pre)
    frac = s_pre - np.floor(s_pre)
    safe = (frac > 1e-3) & (frac < 1.0 - 1e-3)        # away from floor edges
    zr = np.asarray(z_rev)
    zrr = np.asarray(z_rev_ref)
    np.testing.assert_array_equal(zr[safe], zrr[safe])
    np.testing.assert_array_equal(zr[safe], np.asarray(z_int)[safe])  # invertible
    assert np.all(np.abs(zr.astype(np.int64) - zrr.astype(np.int64)) <= 1)

    # (4) reverse with narrow uint8 output (HBM-traffic variant)
    z_rev_u8, ld_rev_u8 = dequantization_reverse(z_fwd, ld_fwd,
                                                 out_dtype=jnp.uint8)
    jax.block_until_ready((z_rev_u8, ld_rev_u8))
    np.testing.assert_array_equal(np.asarray(z_rev_u8).astype(np.int32), zr)
    np.testing.assert_allclose(np.asarray(ld_rev_u8), np.asarray(ld_rev),
                               rtol=1e-6, atol=1e-6)

    print("KERNEL_OK")
</pallas_src>

<mosaic_0001>
module attributes {stable_mosaic.version = 11 : i64} {
  func.func @_dequant_fwd_kernel(%arg0: i32, %arg1: i32, %arg2: memref<2x1024xi8, #tpu.memory_space<vmem>>, %arg3: memref<2x1024xf32, #tpu.memory_space<vmem>>, %arg4: memref<2x1xf32, #tpu.memory_space<vmem>>, %arg5: memref<2x1024xf32, #tpu.memory_space<vmem>>, %arg6: memref<2x1xf32, #tpu.memory_space<vmem>>) attributes {dimension_semantics = [#tpu.dimension_semantics<parallel>, #tpu.dimension_semantics<arbitrary>], iteration_bounds = array<i64: 1, 1>, scalar_prefetch = 0 : i64, scratch_operands = 0 : i64, tpu.core_type = #tpu.core_type<tc>, window_params = [{transform_indices = @transform_0, window_bounds = array<i64: 2, 1024>}, {transform_indices = @transform_1, window_bounds = array<i64: 2, 1024>}, {transform_indices = @transform_2, window_bounds = array<i64: 2, 1>}, {transform_indices = @transform_3, window_bounds = array<i64: 2, 1024>}, {transform_indices = @transform_4, window_bounds = array<i64: 2, 1>}]} {
    %c0 = arith.constant 0 : index
    %c0_0 = arith.constant 0 : index
    %0 = vector.load %arg2[%c0, %c0_0] : memref<2x1024xi8, #tpu.memory_space<vmem>>, vector<2x1024xi8>
    %1 = arith.extui %0 : vector<2x1024xi8> to vector<2x1024xi32>
    %2 = arith.sitofp %1 : vector<2x1024xi32> to vector<2x1024xf32>
    %c0_1 = arith.constant 0 : index
    %c0_2 = arith.constant 0 : index
    %3 = vector.load %arg3[%c0_1, %c0_2] : memref<2x1024xf32, #tpu.memory_space<vmem>>, vector<2x1024xf32>
    %4 = arith.addf %2, %3 : vector<2x1024xf32>
    %cst = arith.constant 3.906250e-03 : f32
    %5 = vector.broadcast %cst : f32 to vector<2x1024xf32>
    %6 = arith.mulf %4, %5 : vector<2x1024xf32>
    %cst_3 = arith.constant 0.999989986 : f32
    %7 = vector.broadcast %cst_3 : f32 to vector<2x1024xf32>
    %8 = arith.mulf %6, %7 : vector<2x1024xf32>
    %cst_4 = arith.constant 5.000000e-06 : f32
    %9 = vector.broadcast %cst_4 : f32 to vector<2x1024xf32>
    %10 = arith.addf %8, %9 : vector<2x1024xf32>
    %11 = math.log %10 : vector<2x1024xf32>
    %cst_5 = arith.constant 1.000000e+00 : f32
    %12 = vector.broadcast %cst_5 : f32 to vector<2x1024xf32>
    %13 = arith.subf %12, %10 : vector<2x1024xf32>
    %14 = math.log %13 : vector<2x1024xf32>
    %15 = arith.subf %11, %14 : vector<2x1024xf32>
    %c0_6 = arith.constant 0 : index
    %c0_7 = arith.constant 0 : index
    %16 = vector.load %arg5[%c0_6, %c0_7] : memref<2x1024xf32, #tpu.memory_space<vmem>>, vector<2x1024xf32>
    tpu.vector_store %arg5[%c0_6, %c0_7], %15 {strides = array<i32>} : memref<2x1024xf32, #tpu.memory_space<vmem>>, vector<2x1024xf32>,
    %cst_8 = arith.constant 0.000000e+00 : f32
    %17 = vector.broadcast %cst_8 : f32 to vector<2x1024xf32>
    %18 = arith.subf %17, %11 : vector<2x1024xf32>
    %19 = arith.subf %18, %14 : vector<2x1024xf32>
    %cst_9 = arith.constant dense<0.000000e+00> : vector<2xf32>
    %20 = vector.multi_reduction <add>, %19, %cst_9 [1] : vector<2x1024xf32> to vector<2xf32>
    %21 = vector.shape_cast %20 : vector<2xf32> to vector<2x1xf32>
    %c0_i32 = arith.constant 0 : i32
    %22 = arith.cmpi eq, %arg1, %c0_i32 : i32
    %23 = arith.extui %22 : i1 to i32
    %c0_i32_10 = arith.constant 0 : i32
    %24 = arith.cmpi ne, %23, %c0_i32_10 : i32
    scf.if %24 {
      %c0_15 = arith.constant 0 : index
      %c0_16 = arith.constant 0 : index
      %28 = vector.load %arg4[%c0_15, %c0_16] : memref<2x1xf32, #tpu.memory_space<vmem>>, vector<2x1xf32>
      %cst_17 = arith.constant -5678.27197 : f32
      %29 = vector.broadcast %cst_17 : f32 to vector<2x1xf32>
      %30 = arith.addf %28, %29 : vector<2x1xf32>
      %c0_18 = arith.constant 0 : index
      %c0_19 = arith.constant 0 : index
      %31 = vector.load %arg6[%c0_18, %c0_19] : memref<2x1xf32, #tpu.memory_space<vmem>>, vector<2x1xf32>
      tpu.vector_store %arg6[%c0_18, %c0_19], %30 {strides = array<i32>} : memref<2x1xf32, #tpu.memory_space<vmem>>, vector<2x1xf32>,
    } else {
    }
    %c0_11 = arith.constant 0 : index
    %c0_12 = arith.constant 0 : index
    %25 = vector.load %arg6[%c0_11, %c0_12] : memref<2x1xf32, #tpu.memory_space<vmem>>, vector<2x1xf32>
    %26 = arith.addf %25, %21 : vector<2x1xf32>
    %c0_13 = arith.constant 0 : index
    %c0_14 = arith.constant 0 : index
    %27 = vector.load %arg6[%c0_13, %c0_14] : memref<2x1xf32, #tpu.memory_space<vmem>>, vector<2x1xf32>
    tpu.vector_store %arg6[%c0_13, %c0_14], %26 {strides = array<i32>} : memref<2x1xf32, #tpu.memory_space<vmem>>, vector<2x1xf32>,
    return
  }
  func.func @transform_0(%arg0: i32, %arg1: i32) -> (i32, i32) {
    %c0_i32 = arith.constant 0 : i32
    return %arg0, %arg1 : i32, i32
  }
  func.func @transform_1(%arg0: i32, %arg1: i32) -> (i32, i32) {
    %c0_i32 = arith.constant 0 : i32
    return %arg0, %arg1 : i32, i32
  }
  func.func @transform_2(%arg0: i32, %arg1: i32) -> (i32, i32) {
    %c0_i32 = arith.constant 0 : i32
    %c0_i32_0 = arith.constant 0 : i32
    return %arg0, %c0_i32 : i32, i32
  }
  func.func @transform_3(%arg0: i32, %arg1: i32) -> (i32, i32) {
    %c0_i32 = arith.constant 0 : i32
    return %arg0, %arg1 : i32, i32
  }
  func.func @transform_4(%arg0: i32, %arg1: i32) -> (i32, i32) {
    %c0_i32 = arith.constant 0 : i32
    %c0_i32_0 = arith.constant 0 : i32
    return %arg0, %c0_i32 : i32, i32
  }
}

</mosaic_0001>

<llo_original>
// kernel: tpu_custom_call.1
$region0: #{tpu_custom_call.1}
  #allocation0 [shape = 'u32[]', space=smem, size = 0x4, offset = 0x4, fixed_abs, tag = 'smem constant byte address 0x4 - core index']
  #allocation1 [shape = 'u32[144,128]{1,0:T(1,128)}', space=vmem, size = 0x12000, scoped, tag = 'internal scratch']
  %s0 = inlined_call_operand.hbm [shape: u8[2,1024], index: 0, kind: input, shape index: {}]
  %s1 = inlined_call_operand.hbm [shape: f32[2,1024], index: 1, kind: input, shape index: {}]
  %s2 = inlined_call_operand.vmem [shape: f32[2,1], index: 2, kind: input, shape index: {}]
  %s3 = inlined_call_operand.hbm [shape: f32[2,1024], index: 3, kind: output, shape index: {0}]
  %s4 = inlined_call_operand.vmem [shape: f32[2,1], index: 4, kind: output, shape index: {1}]
  %5 = xla_tuple %s3, %s4
  %s6 = sld [smem:[#allocation0]]
  $region42: #{tpu_custom_call.1} parent=0
    _
  %s8 = ssub.s32 1, %s6
  %s9 = scalar_select 0, %s8, %s6
  $region1: #{tpu_custom_call.1} parent=0
    #allocation2 [shape = 'u8[4096]{0}', space=vmem, size = 0x1000, scoped, tag = 'input window, operand 0, single buffered']
    #allocation3 [shape = 's32[1]{0}', space=sflag, size = 0x4, scoped, tag = 'scoped memory for tpu_custom_call.1']
    #allocation4 [shape = 's32[1]{0}', space=sflag, size = 0x4, scoped, tag = 'scoped memory for tpu_custom_call.1']
    #allocation5 [shape = 'u8[8192]{0}', space=vmem, size = 0x2000, scoped, tag = 'input window, operand 1, single buffered']
    #allocation6 [shape = 's32[1]{0}', space=sflag, size = 0x4, scoped, tag = 'scoped memory for tpu_custom_call.1']
    #allocation7 [shape = 'u8[8192]{0}', space=vmem, size = 0x2000, scoped, tag = 'output window, operand 0, single buffered']
    %10 = vsyncpa [#allocation3], 0
    %11 = vsyncpa [#allocation6], 0
    %12 = vsyncpa [#allocation4], 0
    // Predicated region
    $region2: #{tpu_custom_call.1} parent=1 // pred_check
      _
    $region3: #{tpu_custom_call.1} parent=1 // pred_check_branch
      %14 = sbr.rel (0) target = $region5
    $region4: #{tpu_custom_call.1} parent=1 // pred_region
      %s16 = ssub.s32 128, 128
      %17 = vsyncadd [#allocation3], %s16
      %s19 = sshll.u32 [#allocation2], 4
      %s20 = int_to_ptr.vmem [resolvable:$true] %s19
      %22 = dma.hbm_to_vmem [thread:$0]  %s0, 128, %s20, [#allocation3]
    $region5: #{tpu_custom_call.1} parent=1 // pred_fallthru
      _
    // Predicated region
    $region6: #{tpu_custom_call.1} parent=1 // pred_check
      _
    $region7: #{tpu_custom_call.1} parent=1 // pred_check_branch
      %24 = sbr.rel (0) target = $region9
    $region8: #{tpu_custom_call.1} parent=1 // pred_region
      %s26 = ssub.s32 256, 256
      %27 = vsyncadd [#allocation6], %s26
      %s29 = sshll.u32 [#allocation5], 4
      %s30 = int_to_ptr.vmem [resolvable:$true] %s29
      %32 = dma.hbm_to_vmem [thread:$0]  %s1, 256, %s30, [#allocation6]
    $region9: #{tpu_custom_call.1} parent=1 // pred_fallthru
      _
    // Predicated region
    $region10: #{tpu_custom_call.1} parent=1 // pred_check
      _
    $region11: #{tpu_custom_call.1} parent=1 // pred_check_branch
      %34 = sbr.rel (0) target = $region13
    $region12: #{tpu_custom_call.1} parent=1 // pred_region
      _
    $region13: #{tpu_custom_call.1} parent=1 // pred_fallthru
      _
    // Predicated region
    $region14: #{tpu_custom_call.1} parent=1 // pred_check
      _
    $region15: #{tpu_custom_call.1} parent=1 // pred_check_branch
      %36 = sbr.rel (0) target = $region17
    $region16: #{tpu_custom_call.1} parent=1 // pred_region
      %37 = dma.done [#allocation3], 128
    $region17: #{tpu_custom_call.1} parent=1 // pred_fallthru
      _
    // Predicated region
    $region18: #{tpu_custom_call.1} parent=1 // pred_check
      _
    $region19: #{tpu_custom_call.1} parent=1 // pred_check_branch
      %39 = sbr.rel (0) target = $region21
    $region20: #{tpu_custom_call.1} parent=1 // pred_region
      %40 = dma.done [#allocation6], 256
    $region21: #{tpu_custom_call.1} parent=1 // pred_fallthru
      _
    %v41 = vld [vmem:[#allocation2] sm:$0xff]
    %v42 = vunpack.c.0.s8 %v41
    %v43 = vunpack.c.1.s8 %v41
    %v44 = vunpack.c.2.s8 %v41
    %v45 = vunpack.c.3.s8 %v41
    %v46 = vand.u32 %v42, 255
    %v47 = vand.u32 %v43, 255
    %v48 = vand.u32 %v44, 255
    %v49 = vand.u32 %v45, 255
    %v50 = vcvt.s32.f32 %v46
    %v51 = vcvt.s32.f32 %v47
    %v52 = vcvt.s32.f32 %v48
    %v53 = vcvt.s32.f32 %v49
    %v54 = vld [vmem:[#allocation5] sm:$0xff]
    %v55 = vld [vmem:[#allocation5 + $0x8] sm:$0xff]
    %v58 = vcombine.high %v54, %v54
    %v60 = vunpack.c.l.s4 1983009808
    %v61 = vunpack.c.0.s8 %v60
    %v62 = vlaneseq
    %v63 = vshrl.u32 %v62, 7
    %v64 = vsub.s32 %v61, %v63
    %v65 = vrot.slane %v54, %v64
    %v67 = vunpack.c.l.s4 1983009808
    %v68 = vunpack.c.0.s8 %v67
    %v69 = vlaneseq
    %v70 = vshrl.u32 %v69, 7
    %v71 = vsub.s32 %v68, %v70
    %v72 = vrot.slane %v58, %v71
    %v73 = vcombine.high %v55, %v55
    %v75 = vunpack.c.l.s4 1983009808
    %v76 = vunpack.c.0.s8 %v75
    %v77 = vlaneseq
    %v78 = vshrl.u32 %v77, 7
    %v79 = vsub.s32 %v76, %v78
    %v80 = vrot.slane %v55, %v79
    %v82 = vunpack.c.l.s4 1983009808
    %v83 = vunpack.c.0.s8 %v82
    %v84 = vlaneseq
    %v85 = vshrl.u32 %v84, 7
    %v86 = vsub.s32 %v83, %v85
    %v87 = vrot.slane %v73, %v86
    %v92 = vadd.f32 %v50, %v65
    %v93 = vadd.f32 %v51, %v72
    %v94 = vadd.f32 %v52, %v80
    %v95 = vadd.f32 %v53, %v87
    %v96 = vmul.f32 %v92, 0.00390625
    %v97 = vmul.f32 %v93, 0.00390625
    %v98 = vmul.f32 %v94, 0.00390625
    %v99 = vmul.f32 %v95, 0.00390625
    %v100 = vmul.f32 %v96, 0.99999
    %v101 = vmul.f32 %v97, 0.99999
    %v102 = vmul.f32 %v98, 0.99999
    %v103 = vmul.f32 %v99, 0.99999
    %v104 = vadd.f32 %v100, 5e-06
    %v105 = vadd.f32 %v101, 5e-06
    %v106 = vadd.f32 %v102, 5e-06
    %v107 = vadd.f32 %v103, 5e-06
    %v108 = vlog2.pop %v104
    %v109 = vmul.f32 %v108, 0.6931472
    %v110 = vlog2.pop %v105
    %v111 = vmul.f32 %v110, 0.6931472
    %v112 = vlog2.pop %v106
    %v113 = vmul.f32 %v112, 0.6931472
    %v114 = vlog2.pop %v107
    %v115 = vmul.f32 %v114, 0.6931472
    %v116 = vsub.f32 1.0, %v104
    %v117 = vsub.f32 1.0, %v105
    %v118 = vsub.f32 1.0, %v106
    %v119 = vsub.f32 1.0, %v107
    %v120 = vlog2.pop %v116
    %v121 = vmul.f32 %v120, 0.6931472
    %v122 = vlog2.pop %v117
    %v123 = vmul.f32 %v122, 0.6931472
    %v124 = vlog2.pop %v118
    %v125 = vmul.f32 %v124, 0.6931472
    %v126 = vlog2.pop %v119
    %v127 = vmul.f32 %v126, 0.6931472
    %v128 = vsub.f32 %v109, %v121
    %v129 = vsub.f32 %v111, %v123
    %v130 = vsub.f32 %v113, %v125
    %v131 = vsub.f32 %v115, %v127
    %v137 = vunpack.c.l.s4 1983009808
    %v138 = vunpack.c.0.s8 %v137
    %v139 = vlaneseq
    %v140 = vshrl.u32 %v139, 7
    %v141 = vsub.s32 %v138, %v140
    %v142 = vrot.slane %v128, %v141
    %v144 = vunpack.c.l.s4 1983009808
    %v145 = vunpack.c.0.s8 %v144
    %v146 = vlaneseq
    %v147 = vshrl.u32 %v146, 7
    %v148 = vsub.s32 %v145, %v147
    %v149 = vrot.slane %v129, %v148
    %v150 = vcombine.low %v142, %v149
    %v152 = vunpack.c.l.s4 1983009808
    %v153 = vunpack.c.0.s8 %v152
    %v154 = vlaneseq
    %v155 = vshrl.u32 %v154, 7
    %v156 = vsub.s32 %v153, %v155
    %v157 = vrot.slane %v130, %v156
    %v159 = vunpack.c.l.s4 1983009808
    %v160 = vunpack.c.0.s8 %v159
    %v161 = vlaneseq
    %v162 = vshrl.u32 %v161, 7
    %v163 = vsub.s32 %v160, %v162
    %v164 = vrot.slane %v131, %v163
    %v165 = vcombine.low %v157, %v164
    %168 = vst [vmem:[#allocation7] sm:$0xff] %v150
    %169 = vst [vmem:[#allocation7 + $0x8] sm:$0xff] %v165
    %v170 = vsub.f32 0.0, %v109
    %v171 = vsub.f32 0.0, %v111
    %v172 = vsub.f32 0.0, %v113
    %v173 = vsub.f32 0.0, %v115
    %v174 = vsub.f32 %v170, %v121
    %v175 = vsub.f32 %v171, %v123
    %v176 = vsub.f32 %v172, %v125
    %v177 = vsub.f32 %v173, %v127
    %v182 = vcombine.high %v174, %v174
    %v183 = vcombine.high %v175, %v175
    %v184 = vcombine.high %v176, %v176
    %v185 = vcombine.high %v177, %v177
    %vm190 = vcmask 1041408
    %v191 = vsel %vm190, %v174, 0.0
    %v192 = vsel %vm190, %v182, 0.0
    %v193 = vadd.f32 %v191, %v192
    %v194 = vsel %vm190, %v175, 0.0
    %v195 = vadd.f32 %v193, %v194
    %v196 = vsel %vm190, %v183, 0.0
    %v197 = vadd.f32 %v195, %v196
    %v198 = vsel %vm190, %v176, 0.0
    %v199 = vadd.f32 %v197, %v198
    %v200 = vsel %vm190, %v184, 0.0
    %v201 = vadd.f32 %v199, %v200
    %v202 = vsel %vm190, %v177, 0.0
    %v203 = vadd.f32 %v201, %v202
    %v204 = vsel %vm190, %v185, 0.0
    %v205 = vadd.f32 %v203, %v204
    %206 = vadd.xlane.f32.xlu0 %v205
    %v207 = vpop.xlane.xlu0 %206
    %p208 = scmp.eq.s32.totalorder 0, 0
    // Predicated region
    $region22: #{tpu_custom_call.1} parent=1 // pred_check
      %p209 = pneg %p208
    $region23: #{tpu_custom_call.1} parent=1 // pred_check_branch
      %211 = sbr.rel (%p209) target = $region25
    $region24: #{tpu_custom_call.1} parent=1 // pred_region
      %v212 = vld [vmem:[%s2] sm:$0x3]
      %v213 = vadd.f32 %v212, -5678.272
      %vm214 = vcmask 1024
      %215 = vst.msk [vmem:[%s4] sm:$0x3] %vm214, %v213
    $region25: #{tpu_custom_call.1} parent=1 // pred_fallthru
      _
    %v216 = vld [vmem:[%s4] sm:$0x3]
    %v217 = vadd.f32 %v216, %v207
    %vm218 = vcmask 1024
    %219 = vst.msk [vmem:[%s4] sm:$0x3] %vm218, %v217
    // Predicated region
    $region26: #{tpu_custom_call.1} parent=1 // pred_check
      _
    $region27: #{tpu_custom_call.1} parent=1 // pred_check_branch
      %221 = sbr.rel (0) target = $region29
    $region28: #{tpu_custom_call.1} parent=1 // pred_region
      %s223 = ssub.s32 256, 256
      %224 = vsyncadd [#allocation4], %s223
      %s226 = sshll.u32 [#allocation7], 4
      %s227 = int_to_ptr.vmem [resolvable:$true] %s226
      %229 = dma.vmem_to_hbm [thread:$0]  %s227, 256, %s3, [#allocation4]
    $region29: #{tpu_custom_call.1} parent=1 // pred_fallthru
      _
    // Predicated region
    $region30: #{tpu_custom_call.1} parent=1 // pred_check
      _
    $region31: #{tpu_custom_call.1} parent=1 // pred_check_branch
      %231 = sbr.rel (0) target = $region33
    $region32: #{tpu_custom_call.1} parent=1 // pred_region
      _
    $region33: #{tpu_custom_call.1} parent=1 // pred_fallthru
      _
    // Predicated region
    $region34: #{tpu_custom_call.1} parent=1 // pred_check
      _
    $region35: #{tpu_custom_call.1} parent=1 // pred_check_branch
      %233 = sbr.rel (0) target = $region37
    $region36: #{tpu_custom_call.1} parent=1 // pred_region
      %234 = dma.done [#allocation4], 256
    $region37: #{tpu_custom_call.1} parent=1 // pred_fallthru
      _
    // Predicated region
    $region38: #{tpu_custom_call.1} parent=1 // pred_check
      _
    $region39: #{tpu_custom_call.1} parent=1 // pred_check_branch
      %236 = sbr.rel (0) target = $region41
    $region40: #{tpu_custom_call.1} parent=1 // pred_region
      _
    $region41: #{tpu_custom_call.1} parent=1 // pred_fallthru
      _
    %237 = vsyncpa [#allocation3], 1
    %238 = vsyncpa [#allocation6], 1
    %239 = vsyncpa [#allocation4], 1

</llo_original>
